<compile_context>
chip_gen: v7x
topology: tpu7x:2x2x1
jax: 0.10.0
libtpu: 0.0.40
codegen_flags: <defaults>
</compile_context>

<pallas_src>
import jax
import jax.numpy as jnp
from jax.experimental import pallas as pl
from jax.experimental.pallas import tpu as pltpu

ALPHA = 0.5
BETA = 0.5
# The fused epilogue ALPHA*(acc + bias) below is only valid because ALPHA == BETA.
assert ALPHA == BETA, "epilogue fold requires alpha == beta"


def gemm_kernel(x_ref, w_ref, b_ref, o_ref):
    # Unrolled VPU MAC over K (K is tiny & static): acc += x[:, k] (outer) w[k, :]
    x = x_ref[...]          # (M, K) f32, one vreg
    w = w_ref[...]          # (K, N) f32, one vreg
    K = x.shape[1]
    acc = x[:, 0:1] * w[0:1, :]                     # (M, N), k = 0
    for k in range(1, K):                           # static Python unroll
        acc = acc + x[:, k:k + 1] * w[k:k + 1, :]
    # alpha == beta == 0.5  =>  alpha*acc + beta*bias == alpha*(acc + bias)
    o_ref[...] = (ALPHA * (acc + b_ref[...])).astype(o_ref.dtype)


def addmm_pallas(x, w, b):
    M, K = x.shape
    K2, N = w.shape
    assert K == K2 and b.shape == (M, N)
    # No grid: single invocation, whole arrays live in VMEM (everything pads
    # to a single (8,128) f32 vreg at this size; no useful tiling exists).
    return pl.pallas_call(
        gemm_kernel,
        out_shape=jax.ShapeDtypeStruct((M, N), jnp.float32),
        in_specs=[
            pl.BlockSpec(memory_space=pltpu.MemorySpace.VMEM),
            pl.BlockSpec(memory_space=pltpu.MemorySpace.VMEM),
            pl.BlockSpec(memory_space=pltpu.MemorySpace.VMEM),
        ],
        out_specs=pl.BlockSpec(memory_space=pltpu.MemorySpace.VMEM),
    )(x, w, b)


if __name__ == "__main__":
    key = jax.random.PRNGKey(0)
    k_x, k_w, k_b = jax.random.split(key, 3)

    # Shapes implied by the module: input (3,4), mat2 (4,5), bias (3,5)
    x = jax.random.normal(k_x, (3, 4), dtype=jnp.float32)
    mat2 = jax.random.normal(k_w, (4, 5), dtype=jnp.float32)  # deterministic "param"
    bias = jax.random.normal(k_b, (3, 5), dtype=jnp.float32)  # deterministic "param"

    out = addmm_pallas(x, mat2, bias)
    jax.block_until_ready(out)

    # correctness check vs plain-JAX reference (original un-folded form)
    ref = BETA * bias + ALPHA * (x @ mat2)
    assert out.shape == (3, 5)
    assert jnp.allclose(out, ref, atol=1e-5, rtol=1e-5), "mismatch vs reference"

    print("KERNEL_OK")
</pallas_src>

<mosaic_0001>
module attributes {stable_mosaic.version = 11 : i64} {
  func.func @gemm_kernel(%arg0: memref<3x4xf32, #tpu.memory_space<vmem>>, %arg1: memref<4x5xf32, #tpu.memory_space<vmem>>, %arg2: memref<3x5xf32, #tpu.memory_space<vmem>>, %arg3: memref<3x5xf32, #tpu.memory_space<vmem>>) attributes {dimension_semantics = [], scalar_prefetch = 0 : i64, scratch_operands = 0 : i64, tpu.core_type = #tpu.core_type<tc>} {
    %c0 = arith.constant 0 : index
    %c0_0 = arith.constant 0 : index
    %0 = vector.load %arg0[%c0, %c0_0] : memref<3x4xf32, #tpu.memory_space<vmem>>, vector<3x4xf32>
    %c0_1 = arith.constant 0 : index
    %c0_2 = arith.constant 0 : index
    %1 = vector.load %arg1[%c0_1, %c0_2] : memref<4x5xf32, #tpu.memory_space<vmem>>, vector<4x5xf32>
    %2 = vector.extract_strided_slice %0 {offsets = [0, 0], sizes = [3, 1], strides = [1, 1]} : vector<3x4xf32> to vector<3x1xf32>
    %3 = vector.extract_strided_slice %1 {offsets = [0, 0], sizes = [1, 5], strides = [1, 1]} : vector<4x5xf32> to vector<1x5xf32>
    %4 = vector.broadcast %2 : vector<3x1xf32> to vector<3x5xf32>
    %5 = vector.broadcast %3 : vector<1x5xf32> to vector<3x5xf32>
    %6 = arith.mulf %4, %5 : vector<3x5xf32>
    %7 = vector.extract_strided_slice %0 {offsets = [0, 1], sizes = [3, 1], strides = [1, 1]} : vector<3x4xf32> to vector<3x1xf32>
    %8 = vector.extract_strided_slice %1 {offsets = [1, 0], sizes = [1, 5], strides = [1, 1]} : vector<4x5xf32> to vector<1x5xf32>
    %9 = vector.broadcast %7 : vector<3x1xf32> to vector<3x5xf32>
    %10 = vector.broadcast %8 : vector<1x5xf32> to vector<3x5xf32>
    %11 = arith.mulf %9, %10 : vector<3x5xf32>
    %12 = arith.addf %6, %11 : vector<3x5xf32>
    %13 = vector.extract_strided_slice %0 {offsets = [0, 2], sizes = [3, 1], strides = [1, 1]} : vector<3x4xf32> to vector<3x1xf32>
    %14 = vector.extract_strided_slice %1 {offsets = [2, 0], sizes = [1, 5], strides = [1, 1]} : vector<4x5xf32> to vector<1x5xf32>
    %15 = vector.broadcast %13 : vector<3x1xf32> to vector<3x5xf32>
    %16 = vector.broadcast %14 : vector<1x5xf32> to vector<3x5xf32>
    %17 = arith.mulf %15, %16 : vector<3x5xf32>
    %18 = arith.addf %12, %17 : vector<3x5xf32>
    %19 = vector.extract_strided_slice %0 {offsets = [0, 3], sizes = [3, 1], strides = [1, 1]} : vector<3x4xf32> to vector<3x1xf32>
    %20 = vector.extract_strided_slice %1 {offsets = [3, 0], sizes = [1, 5], strides = [1, 1]} : vector<4x5xf32> to vector<1x5xf32>
    %21 = vector.broadcast %19 : vector<3x1xf32> to vector<3x5xf32>
    %22 = vector.broadcast %20 : vector<1x5xf32> to vector<3x5xf32>
    %23 = arith.mulf %21, %22 : vector<3x5xf32>
    %24 = arith.addf %18, %23 : vector<3x5xf32>
    %c0_3 = arith.constant 0 : index
    %c0_4 = arith.constant 0 : index
    %25 = vector.load %arg2[%c0_3, %c0_4] : memref<3x5xf32, #tpu.memory_space<vmem>>, vector<3x5xf32>
    %26 = arith.addf %24, %25 : vector<3x5xf32>
    %cst = arith.constant 5.000000e-01 : f32
    %27 = vector.broadcast %cst : f32 to vector<3x5xf32>
    %28 = arith.mulf %27, %26 : vector<3x5xf32>
    %c0_5 = arith.constant 0 : index
    %c0_6 = arith.constant 0 : index
    %29 = vector.load %arg3[%c0_5, %c0_6] : memref<3x5xf32, #tpu.memory_space<vmem>>, vector<3x5xf32>
    tpu.vector_store %arg3[%c0_5, %c0_6], %28 {strides = array<i32>} : memref<3x5xf32, #tpu.memory_space<vmem>>, vector<3x5xf32>,
    return
  }
}

</mosaic_0001>

<llo_original>
// kernel: tpu_custom_call.1
$region0: #{tpu_custom_call.1}
  #allocation0 [shape = 'u32[]', space=smem, size = 0x4, offset = 0x4, fixed_abs, tag = 'smem constant byte address 0x4 - core index']
  #allocation1 [shape = 'u32[144,128]{1,0:T(1,128)}', space=vmem, size = 0x12000, scoped, tag = 'internal scratch']
  %s0 = inlined_call_operand.hbm [shape: f32[3,4], index: 0, kind: input, shape index: {}]
  %s1 = inlined_call_operand.hbm [shape: f32[4,5], index: 1, kind: input, shape index: {}]
  %s2 = inlined_call_operand.vmem [shape: f32[3,5], index: 2, kind: input, shape index: {}]
  %s3 = inlined_call_operand.hbm [shape: f32[3,5], index: 3, kind: output, shape index: {}]
  %s4 = sld [smem:[#allocation0]]
  $region30: #{tpu_custom_call.1} parent=0
    _
  %s6 = ssub.s32 1, %s4
  %s7 = scalar_select 0, %s6, %s4
  $region1: #{tpu_custom_call.1} parent=0
    #allocation2 [shape = 'u8[2048]{0}', space=vmem, size = 0x800, scoped, tag = 'input window, operand 0, single buffered']
    #allocation3 [shape = 's32[1]{0}', space=sflag, size = 0x4, scoped, tag = 'scoped memory for tpu_custom_call.1']
    #allocation4 [shape = 's32[1]{0}', space=sflag, size = 0x4, scoped, tag = 'scoped memory for tpu_custom_call.1']
    #allocation5 [shape = 'u8[2048]{0}', space=vmem, size = 0x800, scoped, tag = 'input window, operand 1, single buffered']
    #allocation6 [shape = 's32[1]{0}', space=sflag, size = 0x4, scoped, tag = 'scoped memory for tpu_custom_call.1']
    #allocation7 [shape = 'u8[2048]{0}', space=vmem, size = 0x800, scoped, tag = 'output window, operand 0, single buffered']
    %8 = vsyncpa [#allocation3], 0
    %9 = vsyncpa [#allocation6], 0
    %10 = vsyncpa [#allocation4], 0
    // Predicated region
    $region2: #{tpu_custom_call.1} parent=1 // pred_check
      _
    $region3: #{tpu_custom_call.1} parent=1 // pred_check_branch
      %12 = sbr.rel (0) target = $region5
    $region4: #{tpu_custom_call.1} parent=1 // pred_region
      %s14 = ssub.s32 64, 64
      %15 = vsyncadd [#allocation3], %s14
      %s17 = sshll.u32 [#allocation2], 4
      %s18 = int_to_ptr.vmem [resolvable:$true] %s17
      %20 = dma.hbm_to_vmem [thread:$0]  %s0, 64, %s18, [#allocation3]
    $region5: #{tpu_custom_call.1} parent=1 // pred_fallthru
      _
    // Predicated region
    $region6: #{tpu_custom_call.1} parent=1 // pred_check
      _
    $region7: #{tpu_custom_call.1} parent=1 // pred_check_branch
      %22 = sbr.rel (0) target = $region9
    $region8: #{tpu_custom_call.1} parent=1 // pred_region
      %s24 = ssub.s32 64, 64
      %25 = vsyncadd [#allocation6], %s24
      %s27 = sshll.u32 [#allocation5], 4
      %s28 = int_to_ptr.vmem [resolvable:$true] %s27
      %30 = dma.hbm_to_vmem [thread:$0]  %s1, 64, %s28, [#allocation6]
    $region9: #{tpu_custom_call.1} parent=1 // pred_fallthru
      _
    // Predicated region
    $region10: #{tpu_custom_call.1} parent=1 // pred_check
      _
    $region11: #{tpu_custom_call.1} parent=1 // pred_check_branch
      %32 = sbr.rel (0) target = $region13
    $region12: #{tpu_custom_call.1} parent=1 // pred_region
      _
    $region13: #{tpu_custom_call.1} parent=1 // pred_fallthru
      _
    // Predicated region
    $region14: #{tpu_custom_call.1} parent=1 // pred_check
      _
    $region15: #{tpu_custom_call.1} parent=1 // pred_check_branch
      %34 = sbr.rel (0) target = $region17
    $region16: #{tpu_custom_call.1} parent=1 // pred_region
      %35 = dma.done [#allocation3], 64
    $region17: #{tpu_custom_call.1} parent=1 // pred_fallthru
      _
    // Predicated region
    $region18: #{tpu_custom_call.1} parent=1 // pred_check
      _
    $region19: #{tpu_custom_call.1} parent=1 // pred_check_branch
      %37 = sbr.rel (0) target = $region21
    $region20: #{tpu_custom_call.1} parent=1 // pred_region
      %38 = dma.done [#allocation6], 64
    $region21: #{tpu_custom_call.1} parent=1 // pred_fallthru
      _
    %v39 = vld [vmem:[#allocation2] sm:$0x7]
    %v40 = vld [vmem:[#allocation5] sm:$0xf]
    %42 = vset.pattern.permute.xlu0 0
    %43 = vperm.xlu0 %42, %v39
    %v44 = vpop.permute.xlu0 %43
    %v46 = vlaneseq
    %v47 = vshrl.u32 %v46, 7
    %v48 = vsub.s32 0, %v47
    %v49 = vrot.slane %v40, %v48
    %v50 = vmul.f32 %v44, %v49
    %51 = vset.pattern.permute.xlu0 1
    %52 = vperm.xlu0 %51, %v39
    %v53 = vpop.permute.xlu0 %52
    %v55 = vlaneseq
    %v56 = vshrl.u32 %v55, 7
    %v57 = vsub.s32 1, %v56
    %v58 = vrot.slane %v40, %v57
    %v59 = vmul.f32 %v53, %v58
    %v60 = vadd.f32 %v50, %v59
    %61 = vset.pattern.permute.xlu0 2
    %62 = vperm.xlu0 %61, %v39
    %v63 = vpop.permute.xlu0 %62
    %v65 = vlaneseq
    %v66 = vshrl.u32 %v65, 7
    %v67 = vsub.s32 2, %v66
    %v68 = vrot.slane %v40, %v67
    %v69 = vmul.f32 %v63, %v68
    %v70 = vadd.f32 %v60, %v69
    %71 = vset.pattern.permute.xlu0 3
    %72 = vperm.xlu0 %71, %v39
    %v73 = vpop.permute.xlu0 %72
    %v75 = vlaneseq
    %v76 = vshrl.u32 %v75, 7
    %v77 = vsub.s32 3, %v76
    %v78 = vrot.slane %v40, %v77
    %v79 = vmul.f32 %v73, %v78
    %v80 = vadd.f32 %v70, %v79
    %v81 = vld [vmem:[%s2] sm:$0x7]
    %v82 = vadd.f32 %v80, %v81
    %v83 = vmul.f32 %v82, 0.5
    %vm84 = vcmask 34816
    %85 = vst.msk [vmem:[#allocation7] sm:$0x7] %vm84, %v83
    // Predicated region
    $region22: #{tpu_custom_call.1} parent=1 // pred_check
      _
    $region23: #{tpu_custom_call.1} parent=1 // pred_check_branch
      %87 = sbr.rel (0) target = $region25
    $region24: #{tpu_custom_call.1} parent=1 // pred_region
      %s89 = ssub.s32 64, 64
      %90 = vsyncadd [#allocation4], %s89
      %s92 = sshll.u32 [#allocation7], 4
      %s93 = int_to_ptr.vmem [resolvable:$true] %s92
      %95 = dma.vmem_to_hbm [thread:$0]  %s93, 64, %s3, [#allocation4]
    $region25: #{tpu_custom_call.1} parent=1 // pred_fallthru
      _
    // Predicated region
    $region26: #{tpu_custom_call.1} parent=1 // pred_check
      _
    $region27: #{tpu_custom_call.1} parent=1 // pred_check_branch
      %97 = sbr.rel (0) target = $region29
    $region28: #{tpu_custom_call.1} parent=1 // pred_region
      %98 = dma.done [#allocation4], 64
    $region29: #{tpu_custom_call.1} parent=1 // pred_fallthru
      _
    %99 = vsyncpa [#allocation3], 1
    %100 = vsyncpa [#allocation6], 1
    %101 = vsyncpa [#allocation4], 1

</llo_original>
